<compile_context>
chip_gen: v5e
topology: v5e:2x2
jax: 0.10.0
libtpu: 0.0.40
codegen_flags: <defaults>
</compile_context>

<pallas_src>
import functools

import jax
import jax.numpy as jnp
from jax.experimental import pallas as pl
from jax.experimental.pallas import tpu as pltpu


# ----------------------------- Pallas kernel ---------------------------------
def _encoder_layer_kernel(
    src_ref,        # (NB, L, E)  batch-major slab of tokens
    wqkv_ref,       # (E, 3E)     x @ wqkv layout, q columns pre-scaled by 1/sqrt(hd)
    wo_ref,         # (E, E)
    w1_ref,         # (E, F)
    w2_ref,         # (F, E)
    vec_ref,        # (8, W)      packed: bqkv, bo, ln1_w, ln1_b, ln2_w, ln2_b, b1, b2
    out_ref,        # (NB, L, E)
    *,
    nhead: int,
):
    NB, L, E = src_ref.shape
    F = w1_ref.shape[1]
    H = nhead
    hd = E // H
    LN = NB * L
    cdt = wqkv_ref.dtype            # MXU operand dtype (fp32 or bf16)

    # packed small params (always fp32)
    bqkv = vec_ref[0, :3 * E]
    bo   = vec_ref[1, :E]
    ln1w = vec_ref[2, :E]
    ln1b = vec_ref[3, :E]
    ln2w = vec_ref[4, :E]
    ln2b = vec_ref[5, :E]
    b1   = vec_ref[6, :F]
    b2   = vec_ref[7, :E]

    # tokens as (NB*L, E) rows; batch-major leading-dim merge (layout-free when L % 8 == 0)
    x = src_ref[...].astype(jnp.float32).reshape(LN, E)

    # ---- fused QKV projection (MXU, fp32 accumulate); scale folded into W_q / b_q ----
    qkv = jnp.dot(x.astype(cdt), wqkv_ref[...],
                  preferred_element_type=jnp.float32) + bqkv          # (LN, 3E)
    q = qkv[:, 0 * E:1 * E].reshape(NB, L, E)
    k = qkv[:, 1 * E:2 * E].reshape(NB, L, E)
    v = qkv[:, 2 * E:3 * E].reshape(NB, L, E)

    # ---- attention: per-head static lane slices, per-batch via a batched einsum ----
    # Each head output is pushed through its (hd, E) row block of W_o and accumulated,
    # so no concat / lane relayout is needed (same total MXU FLOPs as one (E,E) dot).
    attn = None
    for h in range(H):
        sl = slice(h * hd, (h + 1) * hd)
        qh = q[:, :, sl].astype(cdt)                                   # (NB, L, hd)
        kh = k[:, :, sl].astype(cdt)
        vh = v[:, :, sl].astype(cdt)
        s = jnp.einsum('bqd,bkd->bqk', qh, kh,
                       preferred_element_type=jnp.float32)             # (NB, L, L)
        s = s - jnp.max(s, axis=-1, keepdims=True)
        p = jnp.exp(s)
        inv = pl.reciprocal(jnp.sum(p, axis=-1, keepdims=True), approx=True)  # (NB, L, 1)
        o = jnp.einsum('bqk,bkd->bqd', p.astype(cdt), vh,
                       preferred_element_type=jnp.float32)             # (NB, L, hd)
        o = (o * inv).reshape(LN, hd)            # deferred softmax normalization
        contrib = jnp.dot(o.astype(cdt), wo_ref[sl, :],
                          preferred_element_type=jnp.float32)          # (LN, E)
        attn = contrib if attn is None else attn + contrib
    attn = attn + bo

    # ---- residual + LayerNorm 1 (fp32) ----
    y = x + attn
    mu = jnp.mean(y, axis=-1, keepdims=True)
    var = jnp.mean(jnp.square(y - mu), axis=-1, keepdims=True)
    y = (y - mu) * jax.lax.rsqrt(var + 1e-5) * ln1w + ln1b

    # ---- feed-forward: linear1 -> relu -> linear2 ----
    # TODO(synk): F-tile w1/w2 at realistic E/F so the (LN, F) intermediate + weights fit
    #             comfortably in v7x's 64 MiB VMEM.
    h1 = jnp.dot(y.astype(cdt), w1_ref[...],
                 preferred_element_type=jnp.float32) + b1
    h1 = jnp.maximum(h1, 0.0)
    ff = jnp.dot(h1.astype(cdt), w2_ref[...],
                 preferred_element_type=jnp.float32) + b2

    # ---- residual + LayerNorm 2 (fp32) ----
    z = y + ff
    mu2 = jnp.mean(z, axis=-1, keepdims=True)
    var2 = jnp.mean(jnp.square(z - mu2), axis=-1, keepdims=True)
    z = (z - mu2) * jax.lax.rsqrt(var2 + 1e-5) * ln2w + ln2b

    out_ref[...] = z.reshape(NB, L, E).astype(out_ref.dtype)


# --------------------------- parameter packing --------------------------------
def prepare_params(raw, *, nhead, compute_dtype=jnp.float32):
    """Fold the attention scale into wq/bq, pack small vectors, cast MXU weights.

    Done once, offline.  compute_dtype=jnp.bfloat16 is the bf16-MXU path for
    v5e/v6e/v7x (accumulation / LayerNorm / softmax stay fp32 inside the kernel).
    """
    E = raw["wqkv"].shape[0]
    F = raw["w1"].shape[1]
    hd = E // nhead
    scale = 1.0 / (float(hd) ** 0.5)

    wqkv = jnp.concatenate([raw["wqkv"][:, :E] * scale, raw["wqkv"][:, E:]], axis=1)
    bqkv = jnp.concatenate([raw["bqkv"][0, :E] * scale, raw["bqkv"][0, E:]], axis=0)

    W = max(3 * E, F)

    def row(vvec):
        vvec = jnp.asarray(vvec, jnp.float32).reshape(-1)
        return jnp.pad(vvec, (0, W - vvec.shape[0]))

    vec = jnp.stack([
        row(bqkv), row(raw["bo"]),
        row(raw["ln1_w"]), row(raw["ln1_b"]),
        row(raw["ln2_w"]), row(raw["ln2_b"]),
        row(raw["b1"]), row(raw["b2"]),
    ], axis=0)                                             # (8, W) fp32

    return {
        "wqkv": wqkv.astype(compute_dtype),
        "wo":   raw["wo"].astype(compute_dtype),
        "w1":   raw["w1"].astype(compute_dtype),
        "w2":   raw["w2"].astype(compute_dtype),
        "vec":  vec,
    }


# ------------------------------ wrapper ---------------------------------------
@functools.partial(jax.jit, static_argnames=("nhead", "batch_block"))
def transformer_encoder_layer(src, prep, *, nhead, batch_block=1):
    """src: (L, N, E) float32 -> (L, N, E) float32 (forward_post, eval semantics)."""
    L, N, E = src.shape
    F = prep["w1"].shape[1]
    W = prep["vec"].shape[1]
    H = nhead

    NB = batch_block
    assert NB >= 1
    # merging (NB, L) token rows in-kernel is layout-free only when L is a sublane multiple
    assert NB == 1 or L % 8 == 0, "batch_block > 1 requires L % 8 == 0"
    # Note (v6e/v7x): pick NB so NB*L is a multiple of 256 (128 on v5e) for full MXU tiles.

    # Batch-major layout so attention is naturally per-batch and needs no in-kernel
    # transposes (head split is done with static lane slices).
    x = jnp.transpose(src, (1, 0, 2))                      # (N, L, E)

    steps = pl.cdiv(N, NB)
    n_pad = steps * NB
    if n_pad != N:
        x = jnp.pad(x, ((0, n_pad - N), (0, 0), (0, 0)))

    kernel = functools.partial(_encoder_layer_kernel, nhead=nhead)

    # grid-invariant weights: same block every step (Pallas skips the redundant re-fetch).
    # TODO(synk): single-buffer these with pipeline_mode=pl.Buffered(1) at realistic sizes.
    def wspec(shape):
        return pl.BlockSpec(shape, lambda b, _s=len(shape): (0,) * _s)

    # advisory cost estimate so XLA can schedule neighbouring layers around this call
    lnt = n_pad * L
    flops = (2 * lnt * E * 3 * E           # QKV projection
             + 4 * n_pad * L * L * E       # scores + P@V
             + 2 * lnt * E * E             # output projection
             + 4 * lnt * E * F)            # FFN
    wbytes = sum(int(prep[k].size) * prep[k].dtype.itemsize
                 for k in ("wqkv", "wo", "w1", "w2", "vec"))
    cost = pl.CostEstimate(
        flops=int(flops),
        transcendentals=int(n_pad * H * L * L),
        bytes_accessed=int(2 * lnt * E * src.dtype.itemsize + steps * wbytes))

    out = pl.pallas_call(
        kernel,
        out_shape=jax.ShapeDtypeStruct((n_pad, L, E), src.dtype),
        grid=(steps,),
        in_specs=[
            pl.BlockSpec((NB, L, E), lambda b: (b, 0, 0)),   # batch-major token slab
            wspec((E, 3 * E)),                               # wqkv  (grid-invariant)
            wspec((E, E)),                                   # wo
            wspec((E, F)),                                   # w1
            wspec((F, E)),                                   # w2
            wspec((8, W)),                                   # packed small params
        ],
        out_specs=pl.BlockSpec((NB, L, E), lambda b: (b, 0, 0)),
        compiler_params=pltpu.CompilerParams(
            dimension_semantics=("parallel",),               # batch slabs shard over TCs
            vmem_limit_bytes=48 * 1024 * 1024),              # explicit, below v7x's 64 MiB
        cost_estimate=cost,
    )(x, prep["wqkv"], prep["wo"], prep["w1"], prep["w2"], prep["vec"])

    if n_pad != N:
        out = out[:N]
    return jnp.transpose(out, (1, 0, 2))                     # back to (L, N, E)


# -------------------------- pure-JAX reference ---------------------------------
def reference_forward(src, params, *, nhead):
    L, N, E = src.shape
    hd = E // nhead
    scale = 1.0 / (float(hd) ** 0.5)
    out = []
    for b in range(N):
        x = src[:, b, :]                                           # (L, E)
        qkv = x @ params["wqkv"] + params["bqkv"][0]
        q, k, v = qkv[:, :E] * scale, qkv[:, E:2 * E], qkv[:, 2 * E:]
        heads = []
        for h in range(nhead):
            qh, kh, vh = (q[:, h * hd:(h + 1) * hd],
                          k[:, h * hd:(h + 1) * hd],
                          v[:, h * hd:(h + 1) * hd])
            p = jax.nn.softmax(qh @ kh.T, axis=-1)
            heads.append(p @ vh)
        a = jnp.concatenate(heads, -1) @ params["wo"] + params["bo"][0]
        y = x + a
        y = (y - y.mean(-1, keepdims=True)) * jax.lax.rsqrt(
            y.var(-1, keepdims=True) + 1e-5) * params["ln1_w"][0] + params["ln1_b"][0]
        f = jnp.maximum(y @ params["w1"] + params["b1"][0], 0.0) @ params["w2"] + params["b2"][0]
        z = y + f
        z = (z - z.mean(-1, keepdims=True)) * jax.lax.rsqrt(
            z.var(-1, keepdims=True) + 1e-5) * params["ln2_w"][0] + params["ln2_b"][0]
        out.append(z)
    return jnp.stack(out, axis=1)


# ------------------------------- main ------------------------------------------
if __name__ == "__main__":
    # module hyperparams (small, consistent with the nn.Module __init__)
    d_model, nhead, dim_ff = 32, 4, 64
    L, N = 8, 2                                     # seq_len, batch

    key = jax.random.PRNGKey(0)
    ks = jax.random.split(key, 16)

    def init(k, shape, s=0.1):
        return jax.random.normal(k, shape, jnp.float32) * s

    # weights stored already transposed for x @ W usage (raw = un-folded, fp32)
    raw = {
        "wqkv":  init(ks[0], (d_model, 3 * d_model)),
        "bqkv":  init(ks[1], (1, 3 * d_model), 0.02),
        "wo":    init(ks[2], (d_model, d_model)),
        "bo":    init(ks[3], (1, d_model), 0.02),
        "ln1_w": jnp.ones((1, d_model), jnp.float32) + init(ks[4], (1, d_model), 0.01),
        "ln1_b": init(ks[5], (1, d_model), 0.01),
        "ln2_w": jnp.ones((1, d_model), jnp.float32) + init(ks[6], (1, d_model), 0.01),
        "ln2_b": init(ks[7], (1, d_model), 0.01),
        "w1":    init(ks[8], (d_model, dim_ff)),
        "b1":    init(ks[9], (1, dim_ff), 0.02),
        "w2":    init(ks[10], (dim_ff, d_model)),
        "b2":    init(ks[11], (1, d_model), 0.02),
    }

    src = jax.random.normal(ks[12], (L, N, d_model), jnp.float32)
    ref = reference_forward(src, raw, nhead=nhead)

    # fp32 MXU-operand path (exact apart from the EUP approx reciprocal in softmax)
    prep32 = prepare_params(raw, nhead=nhead, compute_dtype=jnp.float32)
    out32 = jax.block_until_ready(transformer_encoder_layer(src, prep32, nhead=nhead))
    assert out32.shape == (L, N, d_model)
    assert jnp.allclose(out32, ref, atol=3e-3, rtol=3e-3), "fp32 path mismatch vs reference"

    # multi-batch slab per grid step (exercises the NB > 1 row-merge path)
    out32b = jax.block_until_ready(
        transformer_encoder_layer(src, prep32, nhead=nhead, batch_block=2))
    assert jnp.allclose(out32b, ref, atol=3e-3, rtol=3e-3), "batch_block=2 path mismatch"

    # bf16 MXU-operand path (v5e/v6e/v7x); LayerNorm, softmax, accumulation remain fp32
    prep16 = prepare_params(raw, nhead=nhead, compute_dtype=jnp.bfloat16)
    out16 = jax.block_until_ready(transformer_encoder_layer(src, prep16, nhead=nhead))
    assert jnp.allclose(out16, ref, atol=5e-2, rtol=5e-2), "bf16 path mismatch vs reference"

    print("KERNEL_OK")
</pallas_src>

<mosaic_0001>
module attributes {stable_mosaic.version = 11 : i64} {
  func.func @_encoder_layer_kernel(%arg0: i32, %arg1: memref<1x8x32xf32, #tpu.memory_space<vmem>>, %arg2: memref<32x96xf32, #tpu.memory_space<vmem>>, %arg3: memref<32x32xf32, #tpu.memory_space<vmem>>, %arg4: memref<32x64xf32, #tpu.memory_space<vmem>>, %arg5: memref<64x32xf32, #tpu.memory_space<vmem>>, %arg6: memref<8x96xf32, #tpu.memory_space<vmem>>, %arg7: memref<1x8x32xf32, #tpu.memory_space<vmem>>) attributes {dimension_semantics = [#tpu.dimension_semantics<parallel>], iteration_bounds = array<i64: 2>, scalar_prefetch = 0 : i64, scratch_operands = 0 : i64, tpu.core_type = #tpu.core_type<tc>, window_params = [{transform_indices = @transform_0, window_bounds = array<i64: 1, 8, 32>}, {pipeline_mode = #tpu.pipeline_mode<synchronous>, transform_indices = @transform_1, window_bounds = array<i64: 32, 96>}, {pipeline_mode = #tpu.pipeline_mode<synchronous>, transform_indices = @transform_2, window_bounds = array<i64: 32, 32>}, {pipeline_mode = #tpu.pipeline_mode<synchronous>, transform_indices = @transform_3, window_bounds = array<i64: 32, 64>}, {pipeline_mode = #tpu.pipeline_mode<synchronous>, transform_indices = @transform_4, window_bounds = array<i64: 64, 32>}, {pipeline_mode = #tpu.pipeline_mode<synchronous>, transform_indices = @transform_5, window_bounds = array<i64: 8, 96>}, {transform_indices = @transform_6, window_bounds = array<i64: 1, 8, 32>}]} {
    %c0 = arith.constant 0 : index
    %c0_0 = arith.constant 0 : index
    %0 = vector.load %arg6[%c0, %c0_0] : memref<8x96xf32, #tpu.memory_space<vmem>>, vector<1x96xf32>
    %1 = vector.shape_cast %0 : vector<1x96xf32> to vector<96xf32>
    %c1 = arith.constant 1 : index
    %c0_1 = arith.constant 0 : index
    %2 = vector.load %arg6[%c1, %c0_1] : memref<8x96xf32, #tpu.memory_space<vmem>>, vector<1x32xf32>
    %3 = vector.shape_cast %2 : vector<1x32xf32> to vector<32xf32>
    %c2 = arith.constant 2 : index
    %c0_2 = arith.constant 0 : index
    %4 = vector.load %arg6[%c2, %c0_2] : memref<8x96xf32, #tpu.memory_space<vmem>>, vector<1x32xf32>
    %5 = vector.shape_cast %4 : vector<1x32xf32> to vector<32xf32>
    %c3 = arith.constant 3 : index
    %c0_3 = arith.constant 0 : index
    %6 = vector.load %arg6[%c3, %c0_3] : memref<8x96xf32, #tpu.memory_space<vmem>>, vector<1x32xf32>
    %7 = vector.shape_cast %6 : vector<1x32xf32> to vector<32xf32>
    %c4 = arith.constant 4 : index
    %c0_4 = arith.constant 0 : index
    %8 = vector.load %arg6[%c4, %c0_4] : memref<8x96xf32, #tpu.memory_space<vmem>>, vector<1x32xf32>
    %9 = vector.shape_cast %8 : vector<1x32xf32> to vector<32xf32>
    %c5 = arith.constant 5 : index
    %c0_5 = arith.constant 0 : index
    %10 = vector.load %arg6[%c5, %c0_5] : memref<8x96xf32, #tpu.memory_space<vmem>>, vector<1x32xf32>
    %11 = vector.shape_cast %10 : vector<1x32xf32> to vector<32xf32>
    %c6 = arith.constant 6 : index
    %c0_6 = arith.constant 0 : index
    %12 = vector.load %arg6[%c6, %c0_6] : memref<8x96xf32, #tpu.memory_space<vmem>>, vector<1x64xf32>
    %13 = vector.shape_cast %12 : vector<1x64xf32> to vector<64xf32>
    %c7 = arith.constant 7 : index
    %c0_7 = arith.constant 0 : index
    %14 = vector.load %arg6[%c7, %c0_7] : memref<8x96xf32, #tpu.memory_space<vmem>>, vector<1x32xf32>
    %15 = vector.shape_cast %14 : vector<1x32xf32> to vector<32xf32>
    %c0_8 = arith.constant 0 : index
    %c0_9 = arith.constant 0 : index
    %c0_10 = arith.constant 0 : index
    %16 = vector.load %arg1[%c0_8, %c0_9, %c0_10] : memref<1x8x32xf32, #tpu.memory_space<vmem>>, vector<1x8x32xf32>
    %17 = vector.shape_cast %16 : vector<1x8x32xf32> to vector<8x32xf32>
    %c0_11 = arith.constant 0 : index
    %c0_12 = arith.constant 0 : index
    %18 = vector.load %arg2[%c0_11, %c0_12] : memref<32x96xf32, #tpu.memory_space<vmem>>, vector<32x96xf32>
    %cst = arith.constant dense<0.000000e+00> : vector<8x96xf32>
    %19 = tpu.matmul %17, %18, %cst {dimension_numbers = #tpu.dot_dimension_numbers<[1], [0], [0], [1], [0, 0, 1, 1], [], []>} : vector<8x32xf32>, vector<32x96xf32>, vector<8x96xf32> -> vector<8x96xf32>
    %20 = vector.shape_cast %1 : vector<96xf32> to vector<1x96xf32>
    %21 = vector.broadcast %20 : vector<1x96xf32> to vector<8x96xf32>
    %22 = arith.addf %19, %21 : vector<8x96xf32>
    %23 = vector.extract_strided_slice %22 {offsets = [0, 0], sizes = [8, 32], strides = [1, 1]} : vector<8x96xf32> to vector<8x32xf32>
    %24 = vector.shape_cast %23 : vector<8x32xf32> to vector<1x8x32xf32>
    %25 = vector.extract_strided_slice %22 {offsets = [0, 32], sizes = [8, 32], strides = [1, 1]} : vector<8x96xf32> to vector<8x32xf32>
    %26 = vector.shape_cast %25 : vector<8x32xf32> to vector<1x8x32xf32>
    %27 = vector.extract_strided_slice %22 {offsets = [0, 64], sizes = [8, 32], strides = [1, 1]} : vector<8x96xf32> to vector<8x32xf32>
    %28 = vector.shape_cast %27 : vector<8x32xf32> to vector<1x8x32xf32>
    %29 = vector.extract_strided_slice %24 {offsets = [0, 0, 0], sizes = [1, 8, 8], strides = [1, 1, 1]} : vector<1x8x32xf32> to vector<1x8x8xf32>
    %30 = vector.extract_strided_slice %26 {offsets = [0, 0, 0], sizes = [1, 8, 8], strides = [1, 1, 1]} : vector<1x8x32xf32> to vector<1x8x8xf32>
    %31 = vector.extract_strided_slice %28 {offsets = [0, 0, 0], sizes = [1, 8, 8], strides = [1, 1, 1]} : vector<1x8x32xf32> to vector<1x8x8xf32>
    "tpu.trace_start"() <{level = 10 : i32, message = "bqd,bkd->bqk"}> : () -> ()
    %cst_13 = arith.constant dense<0.000000e+00> : vector<1x8x8xf32>
    %32 = tpu.matmul %29, %30, %cst_13 {dimension_numbers = #tpu.dot_dimension_numbers<[2], [2], [1], [1], [0, 0, 0, 1, 1, 1], [0], [0]>} : vector<1x8x8xf32>, vector<1x8x8xf32>, vector<1x8x8xf32> -> vector<1x8x8xf32>
    "tpu.trace_stop"() : () -> ()
    %cst_14 = arith.constant dense<0xFF800000> : vector<1x8xf32>
    %33 = vector.multi_reduction <maximumf>, %32, %cst_14 [2] : vector<1x8x8xf32> to vector<1x8xf32>
    %34 = vector.shape_cast %33 : vector<1x8xf32> to vector<1x8x1xf32>
    %35 = vector.broadcast %34 : vector<1x8x1xf32> to vector<1x8x8xf32>
    %36 = arith.subf %32, %35 : vector<1x8x8xf32>
    %37 = math.exp %36 : vector<1x8x8xf32>
    %cst_15 = arith.constant dense<0.000000e+00> : vector<1x8xf32>
    %38 = vector.multi_reduction <add>, %37, %cst_15 [2] : vector<1x8x8xf32> to vector<1x8xf32>
    %39 = vector.shape_cast %38 : vector<1x8xf32> to vector<1x8x1xf32>
    %40 = tpu.reciprocal %39 {approx = true} : vector<1x8x1xf32> -> vector<1x8x1xf32>
    "tpu.trace_start"() <{level = 10 : i32, message = "bqk,bkd->bqd"}> : () -> ()
    %cst_16 = arith.constant dense<0.000000e+00> : vector<1x8x8xf32>
    %41 = tpu.matmul %37, %31, %cst_16 {dimension_numbers = #tpu.dot_dimension_numbers<[2], [1], [1], [2], [0, 0, 0, 1, 1, 2], [0], [0]>} : vector<1x8x8xf32>, vector<1x8x8xf32>, vector<1x8x8xf32> -> vector<1x8x8xf32>
    "tpu.trace_stop"() : () -> ()
    %42 = vector.broadcast %40 : vector<1x8x1xf32> to vector<1x8x8xf32>
    %43 = arith.mulf %41, %42 : vector<1x8x8xf32>
    %44 = vector.shape_cast %43 : vector<1x8x8xf32> to vector<8x8xf32>
    %c0_17 = arith.constant 0 : index
    %c0_18 = arith.constant 0 : index
    %45 = vector.load %arg3[%c0_17, %c0_18] : memref<32x32xf32, #tpu.memory_space<vmem>>, vector<8x32xf32>
    %cst_19 = arith.constant dense<0.000000e+00> : vector<8x32xf32>
    %46 = tpu.matmul %44, %45, %cst_19 {dimension_numbers = #tpu.dot_dimension_numbers<[1], [0], [0], [1], [0, 0, 1, 1], [], []>} : vector<8x8xf32>, vector<8x32xf32>, vector<8x32xf32> -> vector<8x32xf32>
    %47 = vector.extract_strided_slice %24 {offsets = [0, 0, 8], sizes = [1, 8, 8], strides = [1, 1, 1]} : vector<1x8x32xf32> to vector<1x8x8xf32>
    %48 = vector.extract_strided_slice %26 {offsets = [0, 0, 8], sizes = [1, 8, 8], strides = [1, 1, 1]} : vector<1x8x32xf32> to vector<1x8x8xf32>
    %49 = vector.extract_strided_slice %28 {offsets = [0, 0, 8], sizes = [1, 8, 8], strides = [1, 1, 1]} : vector<1x8x32xf32> to vector<1x8x8xf32>
    "tpu.trace_start"() <{level = 10 : i32, message = "bqd,bkd->bqk"}> : () -> ()
    %cst_20 = arith.constant dense<0.000000e+00> : vector<1x8x8xf32>
    %50 = tpu.matmul %47, %48, %cst_20 {dimension_numbers = #tpu.dot_dimension_numbers<[2], [2], [1], [1], [0, 0, 0, 1, 1, 1], [0], [0]>} : vector<1x8x8xf32>, vector<1x8x8xf32>, vector<1x8x8xf32> -> vector<1x8x8xf32>
    "tpu.trace_stop"() : () -> ()
    %cst_21 = arith.constant dense<0xFF800000> : vector<1x8xf32>
    %51 = vector.multi_reduction <maximumf>, %50, %cst_21 [2] : vector<1x8x8xf32> to vector<1x8xf32>
    %52 = vector.shape_cast %51 : vector<1x8xf32> to vector<1x8x1xf32>
    %53 = vector.broadcast %52 : vector<1x8x1xf32> to vector<1x8x8xf32>
    %54 = arith.subf %50, %53 : vector<1x8x8xf32>
    %55 = math.exp %54 : vector<1x8x8xf32>
    %cst_22 = arith.constant dense<0.000000e+00> : vector<1x8xf32>
    %56 = vector.multi_reduction <add>, %55, %cst_22 [2] : vector<1x8x8xf32> to vector<1x8xf32>
    %57 = vector.shape_cast %56 : vector<1x8xf32> to vector<1x8x1xf32>
    %58 = tpu.reciprocal %57 {approx = true} : vector<1x8x1xf32> -> vector<1x8x1xf32>
    "tpu.trace_start"() <{level = 10 : i32, message = "bqk,bkd->bqd"}> : () -> ()
    %cst_23 = arith.constant dense<0.000000e+00> : vector<1x8x8xf32>
    %59 = tpu.matmul %55, %49, %cst_23 {dimension_numbers = #tpu.dot_dimension_numbers<[2], [1], [1], [2], [0, 0, 0, 1, 1, 2], [0], [0]>} : vector<1x8x8xf32>, vector<1x8x8xf32>, vector<1x8x8xf32> -> vector<1x8x8xf32>
    "tpu.trace_stop"() : () -> ()
    %60 = vector.broadcast %58 : vector<1x8x1xf32> to vector<1x8x8xf32>
    %61 = arith.mulf %59, %60 : vector<1x8x8xf32>
    %62 = vector.shape_cast %61 : vector<1x8x8xf32> to vector<8x8xf32>
    %c8 = arith.constant 8 : index
    %c0_24 = arith.constant 0 : index
    %63 = vector.load %arg3[%c8, %c0_24] : memref<32x32xf32, #tpu.memory_space<vmem>>, vector<8x32xf32>
    %cst_25 = arith.constant dense<0.000000e+00> : vector<8x32xf32>
    %64 = tpu.matmul %62, %63, %cst_25 {dimension_numbers = #tpu.dot_dimension_numbers<[1], [0], [0], [1], [0, 0, 1, 1], [], []>} : vector<8x8xf32>, vector<8x32xf32>, vector<8x32xf32> -> vector<8x32xf32>
    %65 = arith.addf %46, %64 : vector<8x32xf32>
    %66 = vector.extract_strided_slice %24 {offsets = [0, 0, 16], sizes = [1, 8, 8], strides = [1, 1, 1]} : vector<1x8x32xf32> to vector<1x8x8xf32>
    %67 = vector.extract_strided_slice %26 {offsets = [0, 0, 16], sizes = [1, 8, 8], strides = [1, 1, 1]} : vector<1x8x32xf32> to vector<1x8x8xf32>
    %68 = vector.extract_strided_slice %28 {offsets = [0, 0, 16], sizes = [1, 8, 8], strides = [1, 1, 1]} : vector<1x8x32xf32> to vector<1x8x8xf32>
    "tpu.trace_start"() <{level = 10 : i32, message = "bqd,bkd->bqk"}> : () -> ()
    %cst_26 = arith.constant dense<0.000000e+00> : vector<1x8x8xf32>
    %69 = tpu.matmul %66, %67, %cst_26 {dimension_numbers = #tpu.dot_dimension_numbers<[2], [2], [1], [1], [0, 0, 0, 1, 1, 1], [0], [0]>} : vector<1x8x8xf32>, vector<1x8x8xf32>, vector<1x8x8xf32> -> vector<1x8x8xf32>
    "tpu.trace_stop"() : () -> ()
    %cst_27 = arith.constant dense<0xFF800000> : vector<1x8xf32>
    %70 = vector.multi_reduction <maximumf>, %69, %cst_27 [2] : vector<1x8x8xf32> to vector<1x8xf32>
    %71 = vector.shape_cast %70 : vector<1x8xf32> to vector<1x8x1xf32>
    %72 = vector.broadcast %71 : vector<1x8x1xf32> to vector<1x8x8xf32>
    %73 = arith.subf %69, %72 : vector<1x8x8xf32>
    %74 = math.exp %73 : vector<1x8x8xf32>
    %cst_28 = arith.constant dense<0.000000e+00> : vector<1x8xf32>
    %75 = vector.multi_reduction <add>, %74, %cst_28 [2] : vector<1x8x8xf32> to vector<1x8xf32>
    %76 = vector.shape_cast %75 : vector<1x8xf32> to vector<1x8x1xf32>
    %77 = tpu.reciprocal %76 {approx = true} : vector<1x8x1xf32> -> vector<1x8x1xf32>
    "tpu.trace_start"() <{level = 10 : i32, message = "bqk,bkd->bqd"}> : () -> ()
    %cst_29 = arith.constant dense<0.000000e+00> : vector<1x8x8xf32>
    %78 = tpu.matmul %74, %68, %cst_29 {dimension_numbers = #tpu.dot_dimension_numbers<[2], [1], [1], [2], [0, 0, 0, 1, 1, 2], [0], [0]>} : vector<1x8x8xf32>, vector<1x8x8xf32>, vector<1x8x8xf32> -> vector<1x8x8xf32>
    "tpu.trace_stop"() : () -> ()
    %79 = vector.broadcast %77 : vector<1x8x1xf32> to vector<1x8x8xf32>
    %80 = arith.mulf %78, %79 : vector<1x8x8xf32>
    %81 = vector.shape_cast %80 : vector<1x8x8xf32> to vector<8x8xf32>
    %c16 = arith.constant 16 : index
    %c0_30 = arith.constant 0 : index
    %82 = vector.load %arg3[%c16, %c0_30] : memref<32x32xf32, #tpu.memory_space<vmem>>, vector<8x32xf32>
    %cst_31 = arith.constant dense<0.000000e+00> : vector<8x32xf32>
    %83 = tpu.matmul %81, %82, %cst_31 {dimension_numbers = #tpu.dot_dimension_numbers<[1], [0], [0], [1], [0, 0, 1, 1], [], []>} : vector<8x8xf32>, vector<8x32xf32>, vector<8x32xf32> -> vector<8x32xf32>
    %84 = arith.addf %65, %83 : vector<8x32xf32>
    %85 = vector.extract_strided_slice %24 {offsets = [0, 0, 24], sizes = [1, 8, 8], strides = [1, 1, 1]} : vector<1x8x32xf32> to vector<1x8x8xf32>
    %86 = vector.extract_strided_slice %26 {offsets = [0, 0, 24], sizes = [1, 8, 8], strides = [1, 1, 1]} : vector<1x8x32xf32> to vector<1x8x8xf32>
    %87 = vector.extract_strided_slice %28 {offsets = [0, 0, 24], sizes = [1, 8, 8], strides = [1, 1, 1]} : vector<1x8x32xf32> to vector<1x8x8xf32>
    "tpu.trace_start"() <{level = 10 : i32, message = "bqd,bkd->bqk"}> : () -> ()
    %cst_32 = arith.constant dense<0.000000e+00> : vector<1x8x8xf32>
    %88 = tpu.matmul %85, %86, %cst_32 {dimension_numbers = #tpu.dot_dimension_numbers<[2], [2], [1], [1], [0, 0, 0, 1, 1, 1], [0], [0]>} : vector<1x8x8xf32>, vector<1x8x8xf32>, vector<1x8x8xf32> -> vector<1x8x8xf32>
    "tpu.trace_stop"() : () -> ()
    %cst_33 = arith.constant dense<0xFF800000> : vector<1x8xf32>
    %89 = vector.multi_reduction <maximumf>, %88, %cst_33 [2] : vector<1x8x8xf32> to vector<1x8xf32>
    %90 = vector.shape_cast %89 : vector<1x8xf32> to vector<1x8x1xf32>
    %91 = vector.broadcast %90 : vector<1x8x1xf32> to vector<1x8x8xf32>
    %92 = arith.subf %88, %91 : vector<1x8x8xf32>
    %93 = math.exp %92 : vector<1x8x8xf32>
    %cst_34 = arith.constant dense<0.000000e+00> : vector<1x8xf32>
    %94 = vector.multi_reduction <add>, %93, %cst_34 [2] : vector<1x8x8xf32> to vector<1x8xf32>
    %95 = vector.shape_cast %94 : vector<1x8xf32> to vector<1x8x1xf32>
    %96 = tpu.reciprocal %95 {approx = true} : vector<1x8x1xf32> -> vector<1x8x1xf32>
    "tpu.trace_start"() <{level = 10 : i32, message = "bqk,bkd->bqd"}> : () -> ()
    %cst_35 = arith.constant dense<0.000000e+00> : vector<1x8x8xf32>
    %97 = tpu.matmul %93, %87, %cst_35 {dimension_numbers = #tpu.dot_dimension_numbers<[2], [1], [1], [2], [0, 0, 0, 1, 1, 2], [0], [0]>} : vector<1x8x8xf32>, vector<1x8x8xf32>, vector<1x8x8xf32> -> vector<1x8x8xf32>
    "tpu.trace_stop"() : () -> ()
    %98 = vector.broadcast %96 : vector<1x8x1xf32> to vector<1x8x8xf32>
    %99 = arith.mulf %97, %98 : vector<1x8x8xf32>
    %100 = vector.shape_cast %99 : vector<1x8x8xf32> to vector<8x8xf32>
    %c24 = arith.constant 24 : index
    %c0_36 = arith.constant 0 : index
    %101 = vector.load %arg3[%c24, %c0_36] : memref<32x32xf32, #tpu.memory_space<vmem>>, vector<8x32xf32>
    %cst_37 = arith.constant dense<0.000000e+00> : vector<8x32xf32>
    %102 = tpu.matmul %100, %101, %cst_37 {dimension_numbers = #tpu.dot_dimension_numbers<[1], [0], [0], [1], [0, 0, 1, 1], [], []>} : vector<8x8xf32>, vector<8x32xf32>, vector<8x32xf32> -> vector<8x32xf32>
    %103 = arith.addf %84, %102 : vector<8x32xf32>
    %104 = vector.shape_cast %3 : vector<32xf32> to vector<1x32xf32>
    %105 = vector.broadcast %104 : vector<1x32xf32> to vector<8x32xf32>
    %106 = arith.addf %103, %105 : vector<8x32xf32>
    %107 = arith.addf %17, %106 : vector<8x32xf32>
    %cst_38 = arith.constant dense<0.000000e+00> : vector<8xf32>
    %108 = vector.multi_reduction <add>, %107, %cst_38 [1] : vector<8x32xf32> to vector<8xf32>
    %109 = vector.shape_cast %108 : vector<8xf32> to vector<8x1xf32>
    %cst_39 = arith.constant 3.200000e+01 : f32
    %110 = vector.broadcast %cst_39 : f32 to vector<8x1xf32>
    %111 = arith.divf %109, %110 : vector<8x1xf32>
    %112 = vector.broadcast %111 : vector<8x1xf32> to vector<8x32xf32>
    %113 = arith.subf %107, %112 : vector<8x32xf32>
    %114 = arith.mulf %113, %113 : vector<8x32xf32>
    %cst_40 = arith.constant dense<0.000000e+00> : vector<8xf32>
    %115 = vector.multi_reduction <add>, %114, %cst_40 [1] : vector<8x32xf32> to vector<8xf32>
    %116 = vector.shape_cast %115 : vector<8xf32> to vector<8x1xf32>
    %cst_41 = arith.constant 3.200000e+01 : f32
    %117 = vector.broadcast %cst_41 : f32 to vector<8x1xf32>
    %118 = arith.divf %116, %117 : vector<8x1xf32>
    %119 = vector.broadcast %111 : vector<8x1xf32> to vector<8x32xf32>
    %120 = arith.subf %107, %119 : vector<8x32xf32>
    %cst_42 = arith.constant 9.99999974E-6 : f32
    %121 = vector.broadcast %cst_42 : f32 to vector<8x1xf32>
    %122 = arith.addf %118, %121 : vector<8x1xf32>
    %123 = math.rsqrt %122 : vector<8x1xf32>
    %124 = vector.broadcast %123 : vector<8x1xf32> to vector<8x32xf32>
    %125 = arith.mulf %120, %124 : vector<8x32xf32>
    %126 = vector.shape_cast %5 : vector<32xf32> to vector<1x32xf32>
    %127 = vector.broadcast %126 : vector<1x32xf32> to vector<8x32xf32>
    %128 = arith.mulf %125, %127 : vector<8x32xf32>
    %129 = vector.shape_cast %7 : vector<32xf32> to vector<1x32xf32>
    %130 = vector.broadcast %129 : vector<1x32xf32> to vector<8x32xf32>
    %131 = arith.addf %128, %130 : vector<8x32xf32>
    %c0_43 = arith.constant 0 : index
    %c0_44 = arith.constant 0 : index
    %132 = vector.load %arg4[%c0_43, %c0_44] : memref<32x64xf32, #tpu.memory_space<vmem>>, vector<32x64xf32>
    %cst_45 = arith.constant dense<0.000000e+00> : vector<8x64xf32>
    %133 = tpu.matmul %131, %132, %cst_45 {dimension_numbers = #tpu.dot_dimension_numbers<[1], [0], [0], [1], [0, 0, 1, 1], [], []>} : vector<8x32xf32>, vector<32x64xf32>, vector<8x64xf32> -> vector<8x64xf32>
    %134 = vector.shape_cast %13 : vector<64xf32> to vector<1x64xf32>
    %135 = vector.broadcast %134 : vector<1x64xf32> to vector<8x64xf32>
    %136 = arith.addf %133, %135 : vector<8x64xf32>
    %cst_46 = arith.constant 0.000000e+00 : f32
    %137 = vector.broadcast %cst_46 : f32 to vector<8x64xf32>
    %138 = arith.maximumf %136, %137 : vector<8x64xf32>
    %c0_47 = arith.constant 0 : index
    %c0_48 = arith.constant 0 : index
    %139 = vector.load %arg5[%c0_47, %c0_48] : memref<64x32xf32, #tpu.memory_space<vmem>>, vector<64x32xf32>
    %cst_49 = arith.constant dense<0.000000e+00> : vector<8x32xf32>
    %140 = tpu.matmul %138, %139, %cst_49 {dimension_numbers = #tpu.dot_dimension_numbers<[1], [0], [0], [1], [0, 0, 1, 1], [], []>} : vector<8x64xf32>, vector<64x32xf32>, vector<8x32xf32> -> vector<8x32xf32>
    %141 = vector.shape_cast %15 : vector<32xf32> to vector<1x32xf32>
    %142 = vector.broadcast %141 : vector<1x32xf32> to vector<8x32xf32>
    %143 = arith.addf %140, %142 : vector<8x32xf32>
    %144 = arith.addf %131, %143 : vector<8x32xf32>
    %cst_50 = arith.constant dense<0.000000e+00> : vector<8xf32>
    %145 = vector.multi_reduction <add>, %144, %cst_50 [1] : vector<8x32xf32> to vector<8xf32>
    %146 = vector.shape_cast %145 : vector<8xf32> to vector<8x1xf32>
    %cst_51 = arith.constant 3.200000e+01 : f32
    %147 = vector.broadcast %cst_51 : f32 to vector<8x1xf32>
    %148 = arith.divf %146, %147 : vector<8x1xf32>
    %149 = vector.broadcast %148 : vector<8x1xf32> to vector<8x32xf32>
    %150 = arith.subf %144, %149 : vector<8x32xf32>
    %151 = arith.mulf %150, %150 : vector<8x32xf32>
    %cst_52 = arith.constant dense<0.000000e+00> : vector<8xf32>
    %152 = vector.multi_reduction <add>, %151, %cst_52 [1] : vector<8x32xf32> to vector<8xf32>
    %153 = vector.shape_cast %152 : vector<8xf32> to vector<8x1xf32>
    %cst_53 = arith.constant 3.200000e+01 : f32
    %154 = vector.broadcast %cst_53 : f32 to vector<8x1xf32>
    %155 = arith.divf %153, %154 : vector<8x1xf32>
    %156 = vector.broadcast %148 : vector<8x1xf32> to vector<8x32xf32>
    %157 = arith.subf %144, %156 : vector<8x32xf32>
    %cst_54 = arith.constant 9.99999974E-6 : f32
    %158 = vector.broadcast %cst_54 : f32 to vector<8x1xf32>
    %159 = arith.addf %155, %158 : vector<8x1xf32>
    %160 = math.rsqrt %159 : vector<8x1xf32>
    %161 = vector.broadcast %160 : vector<8x1xf32> to vector<8x32xf32>
    %162 = arith.mulf %157, %161 : vector<8x32xf32>
    %163 = vector.shape_cast %9 : vector<32xf32> to vector<1x32xf32>
    %164 = vector.broadcast %163 : vector<1x32xf32> to vector<8x32xf32>
    %165 = arith.mulf %162, %164 : vector<8x32xf32>
    %166 = vector.shape_cast %11 : vector<32xf32> to vector<1x32xf32>
    %167 = vector.broadcast %166 : vector<1x32xf32> to vector<8x32xf32>
    %168 = arith.addf %165, %167 : vector<8x32xf32>
    %169 = vector.shape_cast %168 : vector<8x32xf32> to vector<1x8x32xf32>
    %c0_55 = arith.constant 0 : index
    %c0_56 = arith.constant 0 : index
    %c0_57 = arith.constant 0 : index
    %170 = vector.load %arg7[%c0_55, %c0_56, %c0_57] : memref<1x8x32xf32, #tpu.memory_space<vmem>>, vector<1x8x32xf32>
    tpu.vector_store %arg7[%c0_55, %c0_56, %c0_57], %169 {strides = array<i32>} : memref<1x8x32xf32, #tpu.memory_space<vmem>>, vector<1x8x32xf32>,
    return
  }
  func.func @transform_0(%arg0: i32) -> (i32, i32, i32) {
    %c0_i32 = arith.constant 0 : i32
    %c0_i32_0 = arith.constant 0 : i32
    %c0_i32_1 = arith.constant 0 : i32
    return %arg0, %c0_i32, %c0_i32_0 : i32, i32, i32
  }
  func.func @transform_1(%arg0: i32) -> (i32, i32) {
    %c0_i32 = arith.constant 0 : i32
    %c0_i32_0 = arith.constant 0 : i32
    %c0_i32_1 = arith.constant 0 : i32
    return %c0_i32, %c0_i32_0 : i32, i32
  }
  func.func @transform_2(%arg0: i32) -> (i32, i32) {
    %c0_i32 = arith.constant 0 : i32
    %c0_i32_0 = arith.constant 0 : i32
    %c0_i32_1 = arith.constant 0 : i32
    return %c0_i32, %c0_i32_0 : i32, i32
  }
  func.func @transform_3(%arg0: i32) -> (i32, i32) {
    %c0_i32 = arith.constant 0 : i32
    %c0_i32_0 = arith.constant 0 : i32
    %c0_i32_1 = arith.constant 0 : i32
    return %c0_i32, %c0_i32_0 : i32, i32
  }
  func.func @transform_4(%arg0: i32) -> (i32, i32) {
    %c0_i32 = arith.constant 0 : i32
    %c0_i32_0 = arith.constant 0 : i32
    %c0_i32_1 = arith.constant 0 : i32
    return %c0_i32, %c0_i32_0 : i32, i32
  }
  func.func @transform_5(%arg0: i32) -> (i32, i32) {
    %c0_i32 = arith.constant 0 : i32
    %c0_i32_0 = arith.constant 0 : i32
    %c0_i32_1 = arith.constant 0 : i32
    return %c0_i32, %c0_i32_0 : i32, i32
  }
  func.func @transform_6(%arg0: i32) -> (i32, i32, i32) {
    %c0_i32 = arith.constant 0 : i32
    %c0_i32_0 = arith.constant 0 : i32
    %c0_i32_1 = arith.constant 0 : i32
    return %arg0, %c0_i32, %c0_i32_0 : i32, i32, i32
  }
}

</mosaic_0001>

<llo_original>
// kernel: transformer_encoder_layer.1
$region0: #{transformer_encoder_layer.1}
  #allocation0 [shape = 'u32[]', space=smem, size = 0x4, offset = 0x4, fixed_abs, tag = 'smem constant byte address 0x4 - core index']
  #allocation1 [shape = 'u32[72,128]{1,0:T(1,128)}', space=vmem, size = 0x9000, scoped, tag = 'internal scratch']
  %s0 = inlined_call_operand.vmem [shape: f32[2,8,32], index: 0, kind: input, shape index: {}]
  %s1 = inlined_call_operand.vmem [shape: f32[32,96], index: 1, kind: input, shape index: {}]
  %s2 = inlined_call_operand.vmem [shape: f32[32,32], index: 2, kind: input, shape index: {}]
  %s3 = inlined_call_operand.vmem [shape: f32[32,64], index: 3, kind: input, shape index: {}]
  %s4 = inlined_call_operand.vmem [shape: f32[64,32], index: 4, kind: input, shape index: {}]
  %s5 = inlined_call_operand.hbm [shape: f32[8,96], index: 5, kind: input, shape index: {}]
  %s6 = inlined_call_operand.vmem [shape: f32[2,8,32], index: 6, kind: output, shape index: {}]
  %s7 = sld [smem:[#allocation0]]
  $region61: #{transformer_encoder_layer.1} parent=0
    _
  %s9 = ssub.s32 1, %s7
  %s10 = scalar_select 0, %s9, %s7
  $region1: #{transformer_encoder_layer.1} parent=0
    #allocation2 [shape = 'u8[4096]{0}', space=vmem, size = 0x1000, scoped, tag = 'input window, operand 5, single buffered']
    #allocation3 [shape = 's32[2]{0}', space=sflag, size = 0x8, scoped, tag = 'scoped memory for transformer_encoder_layer.1']
    %11 = vsyncpa [#allocation3], 0
    loop: start=0, step=1, limit=4
    $region2: #{transformer_encoder_layer.1} parent=1 // loop_pre_header
      _
    $region3: #{transformer_encoder_layer.1} parent=1 // loop_header
      %s13 = sphi 0, %s17
      %p14 = scmp.ge.s32.totalorder %s13, 4
      %s23 = sphi 0, %s25
      %s26 = sphi 0, %s23
      %s27 = sphi 0, %s26
      %s43 = sphi 0, %s27
      %s47 = sphi 0, %s47
      %s49 = sphi 0, %s47
      %s50 = sphi 0, %s49
      %s64 = sphi 0, %s50
      %s68 = sphi 0, %s68
      %s70 = sphi 0, %s68
      %s71 = sphi 0, %s70
      %s85 = sphi 0, %s71
      %s89 = sphi 0, %s89
      %s91 = sphi 0, %s89
      %s92 = sphi 0, %s91
      %s106 = sphi 0, %s92
      %s110 = sphi 0, %s110
      %s112 = sphi 0, %s110
      %s113 = sphi 0, %s112
      %s127 = sphi 0, %s113
      %s131 = sphi 0, %s131
      %s133 = sphi 0, %s131
      %s134 = sphi 0, %s133
      %s148 = sphi 0, %s134
      %s154 = sphi 0, %s156
      %s157 = sphi 0, %s154
      %s158 = sphi 0, %s157
      %s174 = sphi 0, %s158
    $region4: #{transformer_encoder_layer.1} parent=1 // loop_header_branch
      %16 = sbr.rel (%p14) target = $region8
    $region5: #{transformer_encoder_layer.1} parent=1 // loop_body
      %s18 = ssub.s32 %s13, 1
      %s19 = ssub.s32 %s13, 2
      %s20 = sadd.s32 %s13, 1
      %s21 = ssub.s32 %s13, %s20
      %p22 = scmp.eq.s32.totalorder %s21, 0
      %s24 = sadd.s32 %s23, 1
      %s25 = scalar_select %p22, %s23, %s24
      %p28 = pneg %p22
      %p29 = scmp.eq.s32.totalorder %s13, 1
      %p30 = por %p28, %p29
      %p31 = scmp.ne.s32.totalorder %s23, %s26
      %p32 = scmp.eq.s32.totalorder %s13, 0
      %p33 = por %p31, %p32
      %p34 = scmp.ne.s32.totalorder %s23, %s26
      %p35 = scmp.eq.s32.totalorder %s18, 1
      %p36 = por %p34, %p35
      %p37 = scmp.ne.s32.totalorder %s26, %s27
      %p38 = scmp.eq.s32.totalorder %s18, 0
      %p39 = por %p37, %p38
      %p40 = scmp.ne.s32.totalorder %s26, %s27
      %p41 = scmp.eq.s32.totalorder %s19, 1
      %p42 = por %p40, %p41
      %p44 = scmp.ne.s32.totalorder %s27, %s43
      %p45 = scmp.eq.s32.totalorder %s19, 0
      %p46 = por %p44, %p45
      %s48 = sadd.s32 %s47, 1
      %p51 = scmp.eq.s32.totalorder %s13, 1
      %p52 = scmp.ne.s32.totalorder %s47, %s49
      %p53 = scmp.eq.s32.totalorder %s13, 0
      %p54 = por %p52, %p53
      %p55 = scmp.ne.s32.totalorder %s47, %s49
      %p56 = scmp.eq.s32.totalorder %s18, 1
      %p57 = por %p55, %p56
      %p58 = scmp.ne.s32.totalorder %s49, %s50
      %p59 = scmp.eq.s32.totalorder %s18, 0
      %p60 = por %p58, %p59
      %p61 = scmp.ne.s32.totalorder %s49, %s50
      %p62 = scmp.eq.s32.totalorder %s19, 1
      %p63 = por %p61, %p62
      %p65 = scmp.ne.s32.totalorder %s50, %s64
      %p66 = scmp.eq.s32.totalorder %s19, 0
      %p67 = por %p65, %p66
      %s69 = sadd.s32 %s68, 1
      %p72 = scmp.eq.s32.totalorder %s13, 1
      %p73 = scmp.ne.s32.totalorder %s68, %s70
      %p74 = scmp.eq.s32.totalorder %s13, 0
      %p75 = por %p73, %p74
      %p76 = scmp.ne.s32.totalorder %s68, %s70
      %p77 = scmp.eq.s32.totalorder %s18, 1
      %p78 = por %p76, %p77
      %p79 = scmp.ne.s32.totalorder %s70, %s71
      %p80 = scmp.eq.s32.totalorder %s18, 0
      %p81 = por %p79, %p80
      %p82 = scmp.ne.s32.totalorder %s70, %s71
      %p83 = scmp.eq.s32.totalorder %s19, 1
      %p84 = por %p82, %p83
      %p86 = scmp.ne.s32.totalorder %s71, %s85
      %p87 = scmp.eq.s32.totalorder %s19, 0
      %p88 = por %p86, %p87
      %s90 = sadd.s32 %s89, 1
      %p93 = scmp.eq.s32.totalorder %s13, 1
      %p94 = scmp.ne.s32.totalorder %s89, %s91
      %p95 = scmp.eq.s32.totalorder %s13, 0
      %p96 = por %p94, %p95
      %p97 = scmp.ne.s32.totalorder %s89, %s91
      %p98 = scmp.eq.s32.totalorder %s18, 1
      %p99 = por %p97, %p98
      %p100 = scmp.ne.s32.totalorder %s91, %s92
      %p101 = scmp.eq.s32.totalorder %s18, 0
      %p102 = por %p100, %p101
      %p103 = scmp.ne.s32.totalorder %s91, %s92
      %p104 = scmp.eq.s32.totalorder %s19, 1
      %p105 = por %p103, %p104
      %p107 = scmp.ne.s32.totalorder %s92, %s106
      %p108 = scmp.eq.s32.totalorder %s19, 0
      %p109 = por %p107, %p108
      %s111 = sadd.s32 %s110, 1
      %p114 = scmp.eq.s32.totalorder %s13, 1
      %p115 = scmp.ne.s32.totalorder %s110, %s112
      %p116 = scmp.eq.s32.totalorder %s13, 0
      %p117 = por %p115, %p116
      %p118 = scmp.ne.s32.totalorder %s110, %s112
      %p119 = scmp.eq.s32.totalorder %s18, 1
      %p120 = por %p118, %p119
      %p121 = scmp.ne.s32.totalorder %s112, %s113
      %p122 = scmp.eq.s32.totalorder %s18, 0
      %p123 = por %p121, %p122
      %p124 = scmp.ne.s32.totalorder %s112, %s113
      %p125 = scmp.eq.s32.totalorder %s19, 1
      %p126 = por %p124, %p125
      %p128 = scmp.ne.s32.totalorder %s113, %s127
      %p129 = scmp.eq.s32.totalorder %s19, 0
      %p130 = por %p128, %p129
      %s132 = sadd.s32 %s131, 1
      %p135 = scmp.eq.s32.totalorder %s13, 1
      %p136 = scmp.ne.s32.totalorder %s131, %s133
      %p137 = scmp.eq.s32.totalorder %s13, 0
      %p138 = por %p136, %p137
      %p139 = scmp.ne.s32.totalorder %s131, %s133
      %p140 = scmp.eq.s32.totalorder %s18, 1
      %p141 = por %p139, %p140
      %p142 = scmp.ne.s32.totalorder %s133, %s134
      %p143 = scmp.eq.s32.totalorder %s18, 0
      %p144 = por %p142, %p143
      %p145 = scmp.ne.s32.totalorder %s133, %s134
      %p146 = scmp.eq.s32.totalorder %s19, 1
      %p147 = por %p145, %p146
      %p149 = scmp.ne.s32.totalorder %s134, %s148
      %p150 = scmp.eq.s32.totalorder %s19, 0
      %p151 = por %p149, %p150
      %s152 = ssub.s32 %s13, %s20
      %p153 = scmp.eq.s32.totalorder %s152, 0
      %s155 = sadd.s32 %s154, 1
      %s156 = scalar_select %p153, %s154, %s155
      %p159 = pneg %p153
      %p160 = scmp.eq.s32.totalorder %s13, 1
      %p161 = por %p159, %p160
      %p162 = scmp.ne.s32.totalorder %s154, %s157
      %p163 = scmp.eq.s32.totalorder %s13, 0
      %p164 = por %p162, %p163
      %p165 = scmp.ne.s32.totalorder %s154, %s157
      %p166 = scmp.eq.s32.totalorder %s18, 1
      %p167 = por %p165, %p166
      %p168 = scmp.ne.s32.totalorder %s157, %s158
      %p169 = scmp.eq.s32.totalorder %s18, 0
      %p170 = por %p168, %p169
      %p171 = scmp.ne.s32.totalorder %s157, %s158
      %p172 = scmp.eq.s32.totalorder %s19, 1
      %p173 = por %p171, %p172
      %p175 = scmp.ne.s32.totalorder %s158, %s174
      %p176 = scmp.eq.s32.totalorder %s19, 0
      %p177 = por %p175, %p176
      %p178 = scmp.le.s32.totalorder 1, %s13
      %p179 = scmp.lt.s32.totalorder %s13, 3
      %p180 = pnand %p178, %p179
      %p181 = pneg %p180
      // Predicated region
      $region9: #{transformer_encoder_layer.1} parent=5 // pred_check
        _
      $region10: #{transformer_encoder_layer.1} parent=5 // pred_check_branch
        %183 = sbr.rel (%p180) target = $region12
      $region11: #{transformer_encoder_layer.1} parent=5 // pred_region
        %s184 = ssub.s32 %s13, 1
        // Predicated region
        $region13: #{transformer_encoder_layer.1} parent=11 // pred_check
          %p185 = pneg %p60
        $region14: #{transformer_encoder_layer.1} parent=11 // pred_check_branch
          %187 = sbr.rel (%p185) target = $region16
        $region15: #{transformer_encoder_layer.1} parent=11 // pred_region
          _
        $region16: #{transformer_encoder_layer.1} parent=11 // pred_fallthru
          _
        // Predicated region
        $region17: #{transformer_encoder_layer.1} parent=11 // pred_check
          %p188 = pneg %p81
        $region18: #{transformer_encoder_layer.1} parent=11 // pred_check_branch
          %190 = sbr.rel (%p188) target = $region20
        $region19: #{transformer_encoder_layer.1} parent=11 // pred_region
          _
        $region20: #{transformer_encoder_layer.1} parent=11 // pred_fallthru
          _
        // Predicated region
        $region21: #{transformer_encoder_layer.1} parent=11 // pred_check
          %p191 = pneg %p102
        $region22: #{transformer_encoder_layer.1} parent=11 // pred_check_branch
          %193 = sbr.rel (%p191) target = $region24
        $region23: #{transformer_encoder_layer.1} parent=11 // pred_region
          _
        $region24: #{transformer_encoder_layer.1} parent=11 // pred_fallthru
          _
        // Predicated region
        $region25: #{transformer_encoder_layer.1} parent=11 // pred_check
          %p194 = pneg %p123
        $region26: #{transformer_encoder_layer.1} parent=11 // pred_check_branch
          %196 = sbr.rel (%p194) target = $region28
        $region27: #{transformer_encoder_layer.1} parent=11 // pred_region
          _
        $region28: #{transformer_encoder_layer.1} parent=11 // pred_fallthru
          _
        // Predicated region
        $region29: #{transformer_encoder_layer.1} parent=11 // pred_check
          %p197 = pneg %p144
        $region30: #{transformer_encoder_layer.1} parent=11 // pred_check_branch
          %199 = sbr.rel (%p197) target = $region32
        $region31: #{transformer_encoder_layer.1} parent=11 // pred_region
          %201 = vsyncadd [#allocation3], 0
          %s203 = sshll.u32 %s5, 4
          %s204 = int_to_ptr.hbm [resolvable:$true] %s203
          %s205 = sshll.u32 [#allocation2], 4
          %s206 = int_to_ptr.vmem [resolvable:$true] %s205
          %208 = dma.hbm_to_vmem [thread:$0]  %s204, 128, %s206, [#allocation3]
        $region32: #{transformer_encoder_layer.1} parent=11 // pred_fallthru
          _
      $region12: #{transformer_encoder_layer.1} parent=5 // pred_fallthru
        _
      %p209 = scmp.lt.s32.totalorder %s13, 2
      // Predicated region
      $region33: #{transformer_encoder_layer.1} parent=5 // pred_check
        %p210 = pneg %p209
      $region34: #{transformer_encoder_layer.1} parent=5 // pred_check_branch
        %212 = sbr.rel (%p210) target = $region36
      $region35: #{transformer_encoder_layer.1} parent=5 // pred_region
        // Predicated region
        $region37: #{transformer_encoder_layer.1} parent=35 // pred_check
          %p213 = pneg %p33
        $region38: #{transformer_encoder_layer.1} parent=35 // pred_check_branch
          %215 = sbr.rel (%p213) target = $region40
        $region39: #{transformer_encoder_layer.1} parent=35 // pred_region
          %p216 = scmp.lt.s32.totalorder %s13, 1
          %s217 = scalar_select %p216, %s13, 1
          %s218 = smul.addr %s217, 8
          %s219 = scalar_lea.vmem %s0, %s218
        $region40: #{transformer_encoder_layer.1} parent=35 // pred_fallthru
          _
      $region36: #{transformer_encoder_layer.1} parent=5 // pred_fallthru
        _
      %p220 = scmp.le.s32.totalorder 1, %s13
      %p221 = scmp.lt.s32.totalorder %s13, 3
      %p222 = pnand %p220, %p221
      %p223 = pneg %p222
      // Predicated region
      $region41: #{transformer_encoder_layer.1} parent=5 // pred_check
        _
      $region42: #{transformer_encoder_layer.1} parent=5 // pred_check_branch
        %225 = sbr.rel (%p222) target = $region44
      $region43: #{transformer_encoder_layer.1} parent=5 // pred_region
        %s226 = ssub.s32 %s13, 1
        // Predicated region
        $region45: #{transformer_encoder_layer.1} parent=43 // pred_check
          %p227 = pneg %p144
        $region46: #{transformer_encoder_layer.1} parent=43 // pred_check_branch
          %229 = sbr.rel (%p227) target = $region48
        $region47: #{transformer_encoder_layer.1} parent=43 // pred_region
          %231 = dma.done [#allocation3], 128
        $region48: #{transformer_encoder_layer.1} parent=43 // pred_fallthru
          _
        %p232 = scmp.lt.s32.totalorder %s18, 1
        %s233 = scalar_select %p232, %s18, 1
        %s234 = smul.addr %s233, 8
        %s235 = scalar_lea.vmem %s0, %s234
        %p236 = pneg %p39
        %p237 = pneg %p36
        %p238 = pneg %p60
        %p239 = pneg %p57
        %p240 = pneg %p81
        %p241 = pneg %p78
        %p242 = pneg %p102
        %p243 = pneg %p99
        %p244 = pneg %p123
        %p245 = pneg %p120
        %p246 = pneg %p144
        %p247 = pneg %p141
        %p248 = pneg %p170
        %p249 = pneg %p167
        %p250 = scmp.lt.s32.totalorder %s18, 1
        %s251 = scalar_select %p250, %s18, 1
        %s252 = smul.addr %s251, 8
        %s253 = scalar_lea.vmem %s6, %s252
        %p254 = scmp.lt.s32.totalorder %s18, 1
        %s255 = scalar_select %p254, %s18, 1
        %s256 = smul.addr %s255, 8
        %s257 = scalar_lea.vmem %s0, %s256
        %p258 = scmp.lt.s32.totalorder %s18, 1
        %s259 = scalar_select %p258, %s18, 1
        %s260 = smul.addr %s259, 8
        %s261 = scalar_lea.vmem %s6, %s260
        %v262 = vld [vmem:[#allocation2] sm:$0x1]
        %v263 = vld [vmem:[#allocation2 + $0x1] sm:$0x1]
        %v264 = vld [vmem:[#allocation2 + $0x2] sm:$0x1]
        %v265 = vld [vmem:[#allocation2 + $0x3] sm:$0x1]
        %v266 = vld [vmem:[#allocation2 + $0x4] sm:$0x1]
        %v267 = vld [vmem:[#allocation2 + $0x5] sm:$0x1]
        %v268 = vld [vmem:[#allocation2 + $0x6] sm:$0x1]
        %v269 = vld [vmem:[#allocation2 + $0x7] sm:$0x1]
        %v270 = vld [vmem:[%s257] sm:$0xff]
        %v271 = vld [vmem:[%s1] sm:$0xff]
        %v272 = vld [vmem:[%s1 + $0x8] sm:$0xff]
        %v273 = vld [vmem:[%s1 + $0x10] sm:$0xff]
        %v274 = vld [vmem:[%s1 + $0x18] sm:$0xff]
        %v275 = vperm.slane %v262, 0
        %vm276 = vcmask 261120
        %v278 = vsel %vm276, %v270, 0
        %280 = vmatpush.msra.mxu0 0.0
        %281 = vmatpush.msra.mxu0 0.0
        %282 = vmatpush.msra.mxu0 0.0
        %283 = vmatpush.msra.mxu0 0.0
        %284 = vmatpush.msra.mxu0 0.0
        %285 = vmatpush.msra.mxu0 0.0
        %286 = vmatpush.msra.mxu0 0.0
        %287 = vmatpush.msra.mxu0 0.0
        %288 = vmatpush.msra.mxu0 0.0
        %289 = vmatpush.msra.mxu0 0.0
        %290 = vmatpush.msra.mxu0 0.0
        %291 = vmatpush.msra.mxu0 0.0
        %292 = vmatpush.msra.mxu0 %v274
        %293 = vmatpush.msra.mxu0 %v273
        %294 = vmatpush.msra.mxu0 %v272
        %295 = vmatpush.msra.mxu0 %v271
        %296 = vmatmul.f32.gmra.mxu0 %v278
        %v297 = vpop.f32.mrf.mxu0
        %v298 = vadd.f32 %v275, %v297
        %299 = vdwg.mxu0
        %301 = vrot.lane.b32.xlu0 %v298, 96
        %v302 = vpop.permute.xlu0 %301
        %vm303 = vcmask 64512
        %v304 = vsel %vm303, %v298, 0
        %v306 = vsel %vm303, %v302, 0
        %308 = vmatpush.xpose.msra.mxu0 0.0
        %309 = vmatpush.xpose.msra.mxu0 0.0
        %310 = vmatpush.xpose.msra.mxu0 0.0
        %311 = vmatpush.xpose.msra.mxu0 0.0
        %312 = vmatpush.xpose.msra.mxu0 0.0
        %313 = vmatpush.xpose.msra.mxu0 0.0
        %314 = vmatpush.xpose.msra.mxu0 0.0
        %315 = vmatpush.xpose.msra.mxu0 0.0
        %316 = vmatpush.xpose.msra.mxu0 0.0
        %317 = vmatpush.xpose.msra.mxu0 0.0
        %318 = vmatpush.xpose.msra.mxu0 0.0
        %319 = vmatpush.xpose.msra.mxu0 0.0
        %320 = vmatpush.xpose.msra.mxu0 0.0
        %321 = vmatpush.xpose.msra.mxu0 0.0
        %322 = vmatpush.xpose.msra.mxu0 0.0
        %323 = vmatpush.xpose.msra.mxu0 %v306
        %324 = vmatmul.f32.gmra.mxu0 %v304
        %v325 = vpop.f32.mrf.mxu0
        %v326 = vadd.f32 0.0, %v325
        %327 = vdwg.mxu0
        %v328 = vsel %vm303, %v326, -inf
        %329 = vmax.xlane.f32.xlu0 %v328
        %v330 = vpop.xlane.xlu0 %329
        %v331 = vsub.f32 %v326, %v330
        %v332 = vmul.f32 %v331, 1.442695
        %v333 = vpow.pop %v332
        %v334 = vsel %vm303, %v333, 0.0
        %335 = vadd.xlane.f32.xlu0 %v334
        %v336 = vpop.xlane.xlu0 %335
        %v337 = vrcp.pop %v336
        %338 = vrot.lane.b32.xlu0 %v298, 64
        %v339 = vpop.permute.xlu0 %338
        %v342 = vsel %vm303, %v333, 0
        %344 = vmatpush.msra.mxu0 0.0
        %345 = vmatpush.msra.mxu0 0.0
        %346 = vmatpush.msra.mxu0 0.0
        %347 = vmatpush.msra.mxu0 0.0
        %348 = vmatpush.msra.mxu0 0.0
        %349 = vmatpush.msra.mxu0 0.0
        %350 = vmatpush.msra.mxu0 0.0
        %351 = vmatpush.msra.mxu0 0.0
        %352 = vmatpush.msra.mxu0 0.0
        %353 = vmatpush.msra.mxu0 0.0
        %354 = vmatpush.msra.mxu0 0.0
        %355 = vmatpush.msra.mxu0 0.0
        %356 = vmatpush.msra.mxu0 0.0
        %357 = vmatpush.msra.mxu0 0.0
        %358 = vmatpush.msra.mxu0 0.0
        %359 = vmatpush.msra.mxu0 %v339
        %360 = vmatmul.f32.gmra.mxu0 %v342
        %v361 = vpop.f32.mrf.mxu0
        %v362 = vadd.f32 0.0, %v361
        %363 = vdwg.mxu0
        %v364 = vmul.f32 %v362, %v337
        %v365 = vld [vmem:[%s2] sm:$0xff]
        %366 = vrot.lane.b32.xlu0 %v298, 120
        %v367 = vpop.permute.xlu0 %366
        %368 = vrot.lane.b32.xlu0 %v298, 88
        %v369 = vpop.permute.xlu0 %368
        %v370 = vsel %vm303, %v367, 0
        %v372 = vsel %vm303, %v369, 0
        %374 = vmatpush.xpose.msra.mxu0 0.0
        %375 = vmatpush.xpose.msra.mxu0 0.0
        %376 = vmatpush.xpose.msra.mxu0 0.0
        %377 = vmatpush.xpose.msra.mxu0 0.0
        %378 = vmatpush.xpose.msra.mxu0 0.0
        %379 = vmatpush.xpose.msra.mxu0 0.0
        %380 = vmatpush.xpose.msra.mxu0 0.0
        %381 = vmatpush.xpose.msra.mxu0 0.0
        %382 = vmatpush.xpose.msra.mxu0 0.0
        %383 = vmatpush.xpose.msra.mxu0 0.0
        %384 = vmatpush.xpose.msra.mxu0 0.0
        %385 = vmatpush.xpose.msra.mxu0 0.0
        %386 = vmatpush.xpose.msra.mxu0 0.0
        %387 = vmatpush.xpose.msra.mxu0 0.0
        %388 = vmatpush.xpose.msra.mxu0 0.0
        %389 = vmatpush.xpose.msra.mxu0 %v372
        %390 = vmatmul.f32.gmra.mxu0 %v370
        %v391 = vpop.f32.mrf.mxu0
        %v392 = vadd.f32 0.0, %v391
        %393 = vdwg.mxu0
        %v394 = vsel %vm303, %v392, -inf
        %395 = vmax.xlane.f32.xlu0 %v394
        %v396 = vpop.xlane.xlu0 %395
        %v397 = vsub.f32 %v392, %v396
        %v398 = vmul.f32 %v397, 1.442695
        %v399 = vpow.pop %v398
        %v400 = vsel %vm303, %v399, 0.0
        %401 = vadd.xlane.f32.xlu0 %v400
        %v402 = vpop.xlane.xlu0 %401
        %v403 = vrcp.pop %v402
        %404 = vrot.lane.b32.xlu0 %v298, 56
        %v405 = vpop.permute.xlu0 %404
        %v408 = vsel %vm303, %v399, 0
        %410 = vmatpush.msra.mxu0 0.0
        %411 = vmatpush.msra.mxu0 0.0
        %412 = vmatpush.msra.mxu0 0.0
        %413 = vmatpush.msra.mxu0 0.0
        %414 = vmatpush.msra.mxu0 0.0
        %415 = vmatpush.msra.mxu0 0.0
        %416 = vmatpush.msra.mxu0 0.0
        %417 = vmatpush.msra.mxu0 0.0
        %418 = vmatpush.msra.mxu0 0.0
        %419 = vmatpush.msra.mxu0 0.0
        %420 = vmatpush.msra.mxu0 0.0
        %421 = vmatpush.msra.mxu0 0.0
        %422 = vmatpush.msra.mxu0 0.0
        %423 = vmatpush.msra.mxu0 0.0
        %424 = vmatpush.msra.mxu0 0.0
        %425 = vmatpush.msra.mxu0 %v405
        %426 = vmatmul.f32.gmra.mxu0 %v408
        %v427 = vpop.f32.mrf.mxu0
        %v428 = vadd.f32 0.0, %v427
        %429 = vdwg.mxu0
        %v430 = vmul.f32 %v428, %v403
        %v431 = vld [vmem:[%s2 + $0x8] sm:$0xff]
        %v433 = vsel %vm303, %v430, 0
        %435 = vmatpush.msra.mxu0 0.0
        %436 = vmatpush.msra.mxu0 0.0
        %437 = vmatpush.msra.mxu0 0.0
        %438 = vmatpush.msra.mxu0 0.0
        %439 = vmatpush.msra.mxu0 0.0
        %440 = vmatpush.msra.mxu0 0.0
        %441 = vmatpush.msra.mxu0 0.0
        %442 = vmatpush.msra.mxu0 0.0
        %443 = vmatpush.msra.mxu0 0.0
        %444 = vmatpush.msra.mxu0 0.0
        %445 = vmatpush.msra.mxu0 0.0
        %446 = vmatpush.msra.mxu0 0.0
        %447 = vmatpush.msra.mxu0 0.0
        %448 = vmatpush.msra.mxu0 0.0
        %449 = vmatpush.msra.mxu0 0.0
        %450 = vmatpush.msra.mxu0 %v431
        %451 = vmatmul.f32.gmra.mxu0 %v433
        %v452 = vpop.f32.mrf.mxu0
        %v453 = vadd.f32 0.0, %v452
        %454 = vdwg.mxu0
        %v456 = vsel %vm303, %v364, 0
        %458 = vmatpush.msra.mxu0 0.0
        %459 = vmatpush.msra.mxu0 0.0
        %460 = vmatpush.msra.mxu0 0.0
        %461 = vmatpush.msra.mxu0 0.0
        %462 = vmatpush.msra.mxu0 0.0
        %463 = vmatpush.msra.mxu0 0.0
        %464 = vmatpush.msra.mxu0 0.0
        %465 = vmatpush.msra.mxu0 0.0
        %466 = vmatpush.msra.mxu0 0.0
        %467 = vmatpush.msra.mxu0 0.0
        %468 = vmatpush.msra.mxu0 0.0
        %469 = vmatpush.msra.mxu0 0.0
        %470 = vmatpush.msra.mxu0 0.0
        %471 = vmatpush.msra.mxu0 0.0
        %472 = vmatpush.msra.mxu0 0.0
        %473 = vmatpush.msra.mxu0 %v365
        %474 = vmatmul.f32.gmra.mxu0 %v456
        %v475 = vpop.f32.mrf.mxu0
        %v476 = vadd.f32 %v453, %v475
        %477 = vdwg.mxu0
        %478 = vrot.lane.b32.xlu0 %v298, 112
        %v479 = vpop.permute.xlu0 %478
        %480 = vrot.lane.b32.xlu0 %v298, 80
        %v481 = vpop.permute.xlu0 %480
        %v482 = vsel %vm303, %v479, 0
        %v484 = vsel %vm303, %v481, 0
        %486 = vmatpush.xpose.msra.mxu0 0.0
        %487 = vmatpush.xpose.msra.mxu0 0.0
        %488 = vmatpush.xpose.msra.mxu0 0.0
        %489 = vmatpush.xpose.msra.mxu0 0.0
        %490 = vmatpush.xpose.msra.mxu0 0.0
        %491 = vmatpush.xpose.msra.mxu0 0.0
        %492 = vmatpush.xpose.msra.mxu0 0.0
        %493 = vmatpush.xpose.msra.mxu0 0.0
        %494 = vmatpush.xpose.msra.mxu0 0.0
        %495 = vmatpush.xpose.msra.mxu0 0.0
        %496 = vmatpush.xpose.msra.mxu0 0.0
        %497 = vmatpush.xpose.msra.mxu0 0.0
        %498 = vmatpush.xpose.msra.mxu0 0.0
        %499 = vmatpush.xpose.msra.mxu0 0.0
        %500 = vmatpush.xpose.msra.mxu0 0.0
        %501 = vmatpush.xpose.msra.mxu0 %v484
        %502 = vmatmul.f32.gmra.mxu0 %v482
        %v503 = vpop.f32.mrf.mxu0
        %v504 = vadd.f32 0.0, %v503
        %505 = vdwg.mxu0
        %v506 = vsel %vm303, %v504, -inf
        %507 = vmax.xlane.f32.xlu0 %v506
        %v508 = vpop.xlane.xlu0 %507
        %v509 = vsub.f32 %v504, %v508
        %v510 = vmul.f32 %v509, 1.442695
        %v511 = vpow.pop %v510
        %v512 = vsel %vm303, %v511, 0.0
        %513 = vadd.xlane.f32.xlu0 %v512
        %v514 = vpop.xlane.xlu0 %513
        %v515 = vrcp.pop %v514
        %516 = vrot.lane.b32.xlu0 %v298, 48
        %v517 = vpop.permute.xlu0 %516
        %v520 = vsel %vm303, %v511, 0
        %522 = vmatpush.msra.mxu0 0.0
        %523 = vmatpush.msra.mxu0 0.0
        %524 = vmatpush.msra.mxu0 0.0
        %525 = vmatpush.msra.mxu0 0.0
        %526 = vmatpush.msra.mxu0 0.0
        %527 = vmatpush.msra.mxu0 0.0
        %528 = vmatpush.msra.mxu0 0.0
        %529 = vmatpush.msra.mxu0 0.0
        %530 = vmatpush.msra.mxu0 0.0
        %531 = vmatpush.msra.mxu0 0.0
        %532 = vmatpush.msra.mxu0 0.0
        %533 = vmatpush.msra.mxu0 0.0
        %534 = vmatpush.msra.mxu0 0.0
        %535 = vmatpush.msra.mxu0 0.0
        %536 = vmatpush.msra.mxu0 0.0
        %537 = vmatpush.msra.mxu0 %v517
        %538 = vmatmul.f32.gmra.mxu0 %v520
        %v539 = vpop.f32.mrf.mxu0
        %v540 = vadd.f32 0.0, %v539
        %541 = vdwg.mxu0
        %v542 = vmul.f32 %v540, %v515
        %v543 = vld [vmem:[%s2 + $0x10] sm:$0xff]
        %v545 = vsel %vm303, %v542, 0
        %547 = vmatpush.msra.mxu0 0.0
        %548 = vmatpush.msra.mxu0 0.0
        %549 = vmatpush.msra.mxu0 0.0
        %550 = vmatpush.msra.mxu0 0.0
        %551 = vmatpush.msra.mxu0 0.0
        %552 = vmatpush.msra.mxu0 0.0
        %553 = vmatpush.msra.mxu0 0.0
        %554 = vmatpush.msra.mxu0 0.0
        %555 = vmatpush.msra.mxu0 0.0
        %556 = vmatpush.msra.mxu0 0.0
        %557 = vmatpush.msra.mxu0 0.0
        %558 = vmatpush.msra.mxu0 0.0
        %559 = vmatpush.msra.mxu0 0.0
        %560 = vmatpush.msra.mxu0 0.0
        %561 = vmatpush.msra.mxu0 0.0
        %562 = vmatpush.msra.mxu0 %v543
        %563 = vmatmul.f32.gmra.mxu0 %v545
        %v564 = vpop.f32.mrf.mxu0
        %v565 = vadd.f32 0.0, %v564
        %566 = vdwg.mxu0
        %v567 = vadd.f32 %v476, %v565
        %568 = vrot.lane.b32.xlu0 %v298, 104
        %v569 = vpop.permute.xlu0 %568
        %570 = vrot.lane.b32.xlu0 %v298, 72
        %v571 = vpop.permute.xlu0 %570
        %v572 = vsel %vm303, %v569, 0
        %v574 = vsel %vm303, %v571, 0
        %576 = vmatpush.xpose.msra.mxu0 0.0
        %577 = vmatpush.xpose.msra.mxu0 0.0
        %578 = vmatpush.xpose.msra.mxu0 0.0
        %579 = vmatpush.xpose.msra.mxu0 0.0
        %580 = vmatpush.xpose.msra.mxu0 0.0
        %581 = vmatpush.xpose.msra.mxu0 0.0
        %582 = vmatpush.xpose.msra.mxu0 0.0
        %583 = vmatpush.xpose.msra.mxu0 0.0
        %584 = vmatpush.xpose.msra.mxu0 0.0
        %585 = vmatpush.xpose.msra.mxu0 0.0
        %586 = vmatpush.xpose.msra.mxu0 0.0
        %587 = vmatpush.xpose.msra.mxu0 0.0
        %588 = vmatpush.xpose.msra.mxu0 0.0
        %589 = vmatpush.xpose.msra.mxu0 0.0
        %590 = vmatpush.xpose.msra.mxu0 0.0
        %591 = vmatpush.xpose.msra.mxu0 %v574
        %592 = vmatmul.f32.gmra.mxu0 %v572
        %v593 = vpop.f32.mrf.mxu0
        %v594 = vadd.f32 0.0, %v593
        %595 = vdwg.mxu0
        %v596 = vsel %vm303, %v594, -inf
        %597 = vmax.xlane.f32.xlu0 %v596
        %v598 = vpop.xlane.xlu0 %597
        %v599 = vsub.f32 %v594, %v598
        %v600 = vmul.f32 %v599, 1.442695
        %v601 = vpow.pop %v600
        %v602 = vsel %vm303, %v601, 0.0
        %603 = vadd.xlane.f32.xlu0 %v602
        %v604 = vpop.xlane.xlu0 %603
        %v605 = vrcp.pop %v604
        %606 = vrot.lane.b32.xlu0 %v298, 40
        %v607 = vpop.permute.xlu0 %606
        %v610 = vsel %vm303, %v601, 0
        %612 = vmatpush.msra.mxu0 0.0
        %613 = vmatpush.msra.mxu0 0.0
        %614 = vmatpush.msra.mxu0 0.0
        %615 = vmatpush.msra.mxu0 0.0
        %616 = vmatpush.msra.mxu0 0.0
        %617 = vmatpush.msra.mxu0 0.0
        %618 = vmatpush.msra.mxu0 0.0
        %619 = vmatpush.msra.mxu0 0.0
        %620 = vmatpush.msra.mxu0 0.0
        %621 = vmatpush.msra.mxu0 0.0
        %622 = vmatpush.msra.mxu0 0.0
        %623 = vmatpush.msra.mxu0 0.0
        %624 = vmatpush.msra.mxu0 0.0
        %625 = vmatpush.msra.mxu0 0.0
        %626 = vmatpush.msra.mxu0 0.0
        %627 = vmatpush.msra.mxu0 %v607
        %628 = vmatmul.f32.gmra.mxu0 %v610
        %v629 = vpop.f32.mrf.mxu0
        %v630 = vadd.f32 0.0, %v629
        %631 = vdwg.mxu0
        %v632 = vmul.f32 %v630, %v605
        %v633 = vld [vmem:[%s2 + $0x18] sm:$0xff]
        %v635 = vsel %vm303, %v632, 0
        %637 = vmatpush.msra.mxu0 0.0
        %638 = vmatpush.msra.mxu0 0.0
        %639 = vmatpush.msra.mxu0 0.0
        %640 = vmatpush.msra.mxu0 0.0
        %641 = vmatpush.msra.mxu0 0.0
        %642 = vmatpush.msra.mxu0 0.0
        %643 = vmatpush.msra.mxu0 0.0
        %644 = vmatpush.msra.mxu0 0.0
        %645 = vmatpush.msra.mxu0 0.0
        %646 = vmatpush.msra.mxu0 0.0
        %647 = vmatpush.msra.mxu0 0.0
        %648 = vmatpush.msra.mxu0 0.0
        %649 = vmatpush.msra.mxu0 0.0
        %650 = vmatpush.msra.mxu0 0.0
        %651 = vmatpush.msra.mxu0 0.0
        %652 = vmatpush.msra.mxu0 %v633
        %653 = vmatmul.f32.gmra.mxu0 %v635
        %v654 = vpop.f32.mrf.mxu0
        %v655 = vadd.f32 0.0, %v654
        %656 = vdwg.mxu0
        %v657 = vadd.f32 %v567, %v655
        %v658 = vperm.slane %v263, 0
        %v659 = vadd.f32 %v657, %v658
        %v660 = vadd.f32 %v270, %v659
        %v661 = vsel %vm276, %v660, 0.0
        %662 = vadd.xlane.f32.xlu0 %v661
        %v663 = vpop.xlane.xlu0 %662
        %v664 = vrcp.pop 32.0
        %v665 = vmul.f32 32.0, %v664
        %v666 = vsub.f32 1.0, %v665
        %v667 = vmul.f32 %v664, %v666
        %v668 = vadd.f32 %v664, %v667
        %vm669 = vweird.f32 %v664
        %v670 = vsel %vm669, %v664, %v668
        %v671 = vmul.f32 %v663, %v670
        %v672 = vsub.f32 %v660, %v671
        %v673 = vmul.f32 %v672, %v672
        %v674 = vsel %vm276, %v673, 0.0
        %675 = vadd.xlane.f32.xlu0 %v674
        %v676 = vpop.xlane.xlu0 %675
        %v677 = vmul.f32 %v676, %v670
        %v678 = vadd.f32 %v677, 1e-05
        %v679 = vrsqrt.pop %v678
        %v680 = vmul.f32 %v679, %v678
        %v681 = vmul.f32 %v680, %v679
        %v682 = vmul.f32 0.5, %v681
        %v683 = vsub.f32 1.5, %v682
        %v684 = vmul.f32 %v679, %v683
        %vm685 = vweird.f32 %v678
        %vm686 = vweird.f32 %v679
        %vm687 = vmor %vm685, %vm686
        %v688 = vsel %vm687, %v679, %v684
        %v689 = vmul.f32 %v672, %v688
        %v690 = vperm.slane %v264, 0
        %v691 = vmul.f32 %v689, %v690
        %v692 = vperm.slane %v265, 0
        %v693 = vadd.f32 %v691, %v692
        %v694 = vld [vmem:[%s3] sm:$0xff]
        %v695 = vld [vmem:[%s3 + $0x8] sm:$0xff]
        %v696 = vld [vmem:[%s3 + $0x10] sm:$0xff]
        %v697 = vld [vmem:[%s3 + $0x18] sm:$0xff]
        %v698 = vperm.slane %v268, 0
        %v700 = vsel %vm276, %v693, 0
        %702 = vmatpush.msra.mxu0 0.0
        %703 = vmatpush.msra.mxu0 0.0
        %704 = vmatpush.msra.mxu0 0.0
        %705 = vmatpush.msra.mxu0 0.0
        %706 = vmatpush.msra.mxu0 0.0
        %707 = vmatpush.msra.mxu0 0.0
        %708 = vmatpush.msra.mxu0 0.0
        %709 = vmatpush.msra.mxu0 0.0
        %710 = vmatpush.msra.mxu0 0.0
        %711 = vmatpush.msra.mxu0 0.0
        %712 = vmatpush.msra.mxu0 0.0
        %713 = vmatpush.msra.mxu0 0.0
        %714 = vmatpush.msra.mxu0 %v697
        %715 = vmatpush.msra.mxu0 %v696
        %716 = vmatpush.msra.mxu0 %v695
        %717 = vmatpush.msra.mxu0 %v694
        %718 = vmatmul.f32.gmra.mxu0 %v700
        %v719 = vpop.f32.mrf.mxu0
        %v720 = vadd.f32 %v698, %v719
        %721 = vdwg.mxu0
        %v722 = vmax.f32 %v720, 0.0
        %v723 = vld [vmem:[%s4] sm:$0xff]
        %v724 = vld [vmem:[%s4 + $0x8] sm:$0xff]
        %v725 = vld [vmem:[%s4 + $0x10] sm:$0xff]
        %v726 = vld [vmem:[%s4 + $0x18] sm:$0xff]
        %v727 = vld [vmem:[%s4 + $0x20] sm:$0xff]
        %v728 = vld [vmem:[%s4 + $0x28] sm:$0xff]
        %v729 = vld [vmem:[%s4 + $0x30] sm:$0xff]
        %v730 = vld [vmem:[%s4 + $0x38] sm:$0xff]
        %v731 = vperm.slane %v269, 0
        %vm732 = vcmask 523264
        %v734 = vsel %vm732, %v722, 0
        %736 = vmatpush.msra.mxu0 0.0
        %737 = vmatpush.msra.mxu0 0.0
        %738 = vmatpush.msra.mxu0 0.0
        %739 = vmatpush.msra.mxu0 0.0
        %740 = vmatpush.msra.mxu0 0.0
        %741 = vmatpush.msra.mxu0 0.0
        %742 = vmatpush.msra.mxu0 0.0
        %743 = vmatpush.msra.mxu0 0.0
        %744 = vmatpush.msra.mxu0 %v730
        %745 = vmatpush.msra.mxu0 %v729
        %746 = vmatpush.msra.mxu0 %v728
        %747 = vmatpush.msra.mxu0 %v727
        %748 = vmatpush.msra.mxu0 %v726
        %749 = vmatpush.msra.mxu0 %v725
        %750 = vmatpush.msra.mxu0 %v724
        %751 = vmatpush.msra.mxu0 %v723
        %752 = vmatmul.f32.gmra.mxu0 %v734
        %v753 = vpop.f32.mrf.mxu0
        %v754 = vadd.f32 %v731, %v753
        %755 = vdwg.mxu0
        %v756 = vadd.f32 %v693, %v754
        %v757 = vsel %vm276, %v756, 0.0
        %758 = vadd.xlane.f32.xlu0 %v757
        %v759 = vpop.xlane.xlu0 %758
        %v760 = vmul.f32 %v759, %v670
        %v761 = vsub.f32 %v756, %v760
        %v762 = vmul.f32 %v761, %v761
        %v763 = vsel %vm276, %v762, 0.0
        %764 = vadd.xlane.f32.xlu0 %v763
        %v765 = vpop.xlane.xlu0 %764
        %v766 = vmul.f32 %v765, %v670
        %v767 = vadd.f32 %v766, 1e-05
        %v768 = vrsqrt.pop %v767
        %v769 = vmul.f32 %v768, %v767
        %v770 = vmul.f32 %v769, %v768
        %v771 = vmul.f32 0.5, %v770
        %v772 = vsub.f32 1.5, %v771
        %v773 = vmul.f32 %v768, %v772
        %vm774 = vweird.f32 %v767
        %vm775 = vweird.f32 %v768
        %vm776 = vmor %vm774, %vm775
        %v777 = vsel %vm776, %v768, %v773
        %v778 = vmul.f32 %v761, %v777
        %v779 = vperm.slane %v266, 0
        %v780 = vmul.f32 %v778, %v779
        %v781 = vperm.slane %v267, 0
        %v782 = vadd.f32 %v780, %v781
        %783 = vst.msk [vmem:[%s261] sm:$0xff] %vm276, %v782
        %p784 = scmp.lt.s32.totalorder %s18, 1
        %s785 = scalar_select %p784, %s18, 1
        %s786 = smul.addr %s785, 8
        %s787 = scalar_lea.vmem %s6, %s786
        // Predicated region
        $region49: #{transformer_encoder_layer.1} parent=43 // pred_check
          %p788 = pneg %p167
        $region50: #{transformer_encoder_layer.1} parent=43 // pred_check_branch
          %790 = sbr.rel (%p788) target = $region52
        $region51: #{transformer_encoder_layer.1} parent=43 // pred_region
          _
        $region52: #{transformer_encoder_layer.1} parent=43 // pred_fallthru
          _
      $region44: #{transformer_encoder_layer.1} parent=5 // pred_fallthru
        _
      %p791 = scmp.le.s32.totalorder 2, %s13
      // Predicated region
      $region53: #{transformer_encoder_layer.1} parent=5 // pred_check
        %p792 = pneg %p791
      $region54: #{transformer_encoder_layer.1} parent=5 // pred_check_branch
        %794 = sbr.rel (%p792) target = $region56
      $region55: #{transformer_encoder_layer.1} parent=5 // pred_region
        %s795 = ssub.s32 %s13, 2
        // Predicated region
        $region57: #{transformer_encoder_layer.1} parent=55 // pred_check
          %p796 = pneg %p173
        $region58: #{transformer_encoder_layer.1} parent=55 // pred_check_branch
          %798 = sbr.rel (%p796) target = $region60
        $region59: #{transformer_encoder_layer.1} parent=55 // pred_region
          %p799 = scmp.lt.s32.totalorder %s19, 1
          %s800 = scalar_select %p799, %s19, 1
          %s801 = smul.addr %s800, 8
          %s802 = scalar_lea.vmem %s6, %s801
        $region60: #{transformer_encoder_layer.1} parent=55 // pred_fallthru
          _
      $region56: #{transformer_encoder_layer.1} parent=5 // pred_fallthru
        _
    $region6: #{transformer_encoder_layer.1} parent=1 // loop_footer
      %s17 = sadd.s32 1, %s13
    $region7: #{transformer_encoder_layer.1} parent=1 // loop_footer_branch
      %12 = sbr.rel target = $region3
    $region8: #{transformer_encoder_layer.1} parent=1 // loop_exit
      _
    %803 = vsyncpa [#allocation3], 1
    %s804 = scalar_lea.sflag [#allocation3], 1
    %805 = vsyncpa %s804, 1

</llo_original>
